<compile_context>
chip_gen: v7x
topology: tpu7x:2x2x1
jax: 0.10.0
libtpu: 0.0.40
codegen_flags: <defaults>
</compile_context>

<pallas_src>
import functools
import math

import jax
import jax.numpy as jnp
from jax.experimental import pallas as pl
from jax.experimental.pallas import tpu as pltpu

# ---- ModelArgs(d_model=32) with defaults -----------------------------------
D_MODEL = 32
EXPAND = 2
D_INNER = EXPAND * D_MODEL            # 64
D_STATE = 16
DT_RANK = math.ceil(D_MODEL / 16)     # 2
D_CONV = 4
DT_MIN, DT_MAX, DT_INIT_FLOOR = 0.001, 0.1, 0.0001

BATCH = 2
SEQ = 8

# Rows of the packed (8, 128) bias/scale slab.
_ROW_B_IN, _ROW_CONV_W, _ROW_CONV_B, _ROW_B_DT, _ROW_D, _ROW_B_OUT = range(6)


def mamba_block_kernel(batch, seq, x_ref, w_in_ref, w_cat_ref, w_out_ref,
                       vec_ref, o_ref):
    """Whole MambaBlock forward on the flattened (B*L, d_model) batch.

    x_ref    : (B*L, d_model)
    w_in_ref : (d_model, 2*d_inner)
    w_cat_ref: (d_inner, d_inner + 2*d_state)   = [W_x_dt @ W_dt | W_B | W_C]
    w_out_ref: (d_inner, d_model)
    vec_ref  : (8, 128) packed bias/scale slab
    o_ref    : (B*L, d_model)
    """
    d_inner, n = D_INNER, D_STATE

    xb = x_ref[...]                                            # (B*L, d_model)

    # ---- in_proj + split ----------------------------------------------------
    b_in = vec_ref[_ROW_B_IN:_ROW_B_IN + 1, :2 * d_inner]      # (1, 2*d_inner)
    xr = jnp.dot(xb, w_in_ref[...], preferred_element_type=jnp.float32) + b_in
    x_in = xr[:, :d_inner]                                     # (B*L, d_inner)
    res = xr[:, d_inner:]                                      # (B*L, d_inner)

    # ---- conv1d(pad=d_conv-1)[:, :, :1]  ->  last tap * x[t=0] + bias -------
    conv_w = vec_ref[_ROW_CONV_W:_ROW_CONV_W + 1, :d_inner]    # (1, d_inner)
    conv_b = vec_ref[_ROW_CONV_B:_ROW_CONV_B + 1, :d_inner]    # (1, d_inner)
    x0 = jnp.concatenate(
        [x_in[b * seq:b * seq + 1, :] for b in range(batch)], axis=0)  # (B, d_inner)
    xc = x0 * conv_w + conv_b
    xc = xc * jax.nn.sigmoid(xc)                               # SiLU

    # ---- ssm: single timestep from zero state (A_log term vanishes) ---------
    b_dt = vec_ref[_ROW_B_DT:_ROW_B_DT + 1, :d_inner]          # (1, d_inner)
    d_p = vec_ref[_ROW_D:_ROW_D + 1, :d_inner]                 # (1, d_inner)
    x_dbl = jnp.dot(xc, w_cat_ref[...], preferred_element_type=jnp.float32)
    delta = jax.nn.softplus(x_dbl[:, :d_inner] + b_dt)         # (B, d_inner)
    Bc = x_dbl[:, d_inner:d_inner + n]                         # (B, n)
    Cc = x_dbl[:, d_inner + n:]                                # (B, n)
    # state = delta*B*u ;  y = sum_n state*C  =  (B . C) * (delta * u)
    y_row = jnp.sum(Bc * Cc, axis=-1, keepdims=True) * (delta * xc)
    y_row = y_row + xc * d_p                                   # (B, d_inner)

    # ---- gate (y broadcast over L, as in the torch code) + out_proj ---------
    y_full = jnp.concatenate(
        [jnp.broadcast_to(y_row[b:b + 1, :], (seq, d_inner)) for b in range(batch)],
        axis=0)                                                # (B*L, d_inner)
    gated = y_full * (res * jax.nn.sigmoid(res))
    b_out = vec_ref[_ROW_B_OUT:_ROW_B_OUT + 1, :D_MODEL]       # (1, d_model)
    out = jnp.dot(gated, w_out_ref[...], preferred_element_type=jnp.float32) + b_out
    o_ref[...] = out.astype(o_ref.dtype)                       # single dense store


def pack_params(params):
    """Wrapper-side weight prep: fold dt projection, pack bias vectors."""
    (w_in, b_in, conv_w_last, conv_b, w_x, w_dt, b_dt, _a_log, d_p, w_out,
     b_out) = params
    # Fold the low-rank dt path:  (xc @ W_x_dt) @ W_dt == xc @ (W_x_dt @ W_dt).
    w_delta = jnp.dot(w_x[:, :DT_RANK], w_dt, precision="highest")  # (d_inner, d_inner)
    w_cat = jnp.concatenate([w_delta, w_x[:, DT_RANK:]], axis=1)    # (d_inner, d_inner+2n)

    vec = jnp.zeros((8, 128), jnp.float32)
    vec = vec.at[_ROW_B_IN, :2 * D_INNER].set(b_in[0])
    vec = vec.at[_ROW_CONV_W, :D_INNER].set(conv_w_last[0])
    vec = vec.at[_ROW_CONV_B, :D_INNER].set(conv_b[0])
    vec = vec.at[_ROW_B_DT, :D_INNER].set(b_dt[0])
    vec = vec.at[_ROW_D, :D_INNER].set(d_p[0])
    vec = vec.at[_ROW_B_OUT, :D_MODEL].set(b_out[0])
    # a_log is dead in this forward (single-step scan from zero state): dropped.
    return w_in, w_cat, w_out, vec


def mamba_block_forward(x, params):
    b, l, d_model = x.shape
    w_in, w_cat, w_out, vec = pack_params(params)
    x_flat = x.reshape(b * l, d_model)

    vmem = lambda: pl.BlockSpec(memory_space=pltpu.MemorySpace.VMEM)
    out_flat = pl.pallas_call(
        functools.partial(mamba_block_kernel, b, l),
        out_shape=jax.ShapeDtypeStruct((b * l, d_model), x.dtype),
        in_specs=[vmem(), vmem(), vmem(), vmem(), vmem()],
        out_specs=vmem(),
    )(x_flat, w_in, w_cat, w_out, vec)
    return out_flat.reshape(b, l, d_model)


def init_params(key):
    keys = jax.random.split(key, 9)
    dt_init_std = DT_RANK ** (-0.5) * 1.0

    w_in = jax.random.uniform(keys[0], (D_MODEL, 2 * D_INNER), jnp.float32,
                              -1.0, 1.0) / math.sqrt(D_MODEL)
    b_in = jax.random.uniform(keys[1], (1, 2 * D_INNER), jnp.float32,
                              -1.0, 1.0) / math.sqrt(D_MODEL)

    # depthwise conv weight has torch shape (d_inner, 1, d_conv); only the
    # last tap reaches the output because of the `[:, :, :1]` slice.
    conv_w_full = jax.random.uniform(keys[2], (D_INNER, 1, D_CONV), jnp.float32,
                                     -1.0, 1.0) / math.sqrt(D_CONV)
    conv_w_last = conv_w_full[:, 0, D_CONV - 1].reshape(1, D_INNER)
    conv_b = jax.random.uniform(keys[3], (1, D_INNER), jnp.float32,
                                -1.0, 1.0) / math.sqrt(D_CONV)

    w_x = jax.random.uniform(keys[4], (D_INNER, DT_RANK + 2 * D_STATE),
                             jnp.float32, -1.0, 1.0) / math.sqrt(D_INNER)

    # dt_proj: weight ~ U(-std, std); bias = inverse-softplus of sampled dt.
    w_dt = jax.random.uniform(keys[5], (DT_RANK, D_INNER), jnp.float32,
                              -dt_init_std, dt_init_std)
    dt = jnp.exp(jax.random.uniform(keys[6], (D_INNER,), jnp.float32)
                 * (math.log(DT_MAX) - math.log(DT_MIN)) + math.log(DT_MIN))
    dt = jnp.maximum(dt, DT_INIT_FLOOR)
    inv_dt = dt + jnp.log(-jnp.expm1(-dt))
    b_dt = inv_dt.reshape(1, D_INNER)

    # A_log = log(repeat(arange(1, d_state+1), 'n -> d n'));  D = ones.
    # (A_log is kept here for module parity but is dead in this forward.)
    a_log = jnp.log(jnp.tile(jnp.arange(1, D_STATE + 1, dtype=jnp.float32),
                             (D_INNER, 1)))
    d_p = jnp.ones((1, D_INNER), jnp.float32)

    w_out = jax.random.uniform(keys[7], (D_INNER, D_MODEL), jnp.float32,
                               -1.0, 1.0) / math.sqrt(D_INNER)
    b_out = jax.random.uniform(keys[8], (1, D_MODEL), jnp.float32,
                               -1.0, 1.0) / math.sqrt(D_INNER)

    return (w_in, b_in, conv_w_last, conv_b, w_x, w_dt, b_dt, a_log, d_p,
            w_out, b_out)


def mamba_block_ref(x, params):
    """Pure-JAX reference mirroring the PyTorch forward exactly."""
    (w_in, b_in, conv_w_last, conv_b, w_x, w_dt, b_dt, _a_log, d_p, w_out,
     b_out) = params
    with jax.default_matmul_precision("highest"):
        xr = x @ w_in + b_in
        x_in, res = xr[..., :D_INNER], xr[..., D_INNER:]
        xc = x_in[:, 0:1, :] * conv_w_last + conv_b          # conv[:, :, :1]
        xc = xc * jax.nn.sigmoid(xc)
        x_dbl = xc @ w_x
        delta = x_dbl[..., :DT_RANK]
        Bc = x_dbl[..., DT_RANK:DT_RANK + D_STATE]
        Cc = x_dbl[..., DT_RANK + D_STATE:]
        delta = jax.nn.softplus(delta @ w_dt + b_dt)         # (b,1,d_inner)
        # single scan step from zero state: state = delta * B * u
        deltaB_u = delta[..., None] * Bc[..., None, :] * xc[..., None]
        y = jnp.sum(deltaB_u[:, 0] * Cc[:, 0, None, :], axis=-1)  # (b, d_inner)
        y = y[:, None, :] + xc * d_p
        y = y * (res * jax.nn.sigmoid(res))
        return y @ w_out + b_out


if __name__ == "__main__":
    root = jax.random.PRNGKey(0)
    pkey, xkey = jax.random.split(root)
    params = init_params(pkey)
    x = jax.random.normal(xkey, (BATCH, SEQ, D_MODEL), jnp.float32)

    out = mamba_block_forward(x, params)
    out = jax.block_until_ready(out)

    ref = mamba_block_ref(x, params)
    assert out.shape == (BATCH, SEQ, D_MODEL)
    if not bool(jnp.allclose(out, ref, rtol=2e-2, atol=2e-2)):
        raise AssertionError(
            f"kernel/ref mismatch, max abs err = {float(jnp.max(jnp.abs(out - ref)))}")
    print("KERNEL_OK")
</pallas_src>

<mosaic_0001>
module attributes {stable_mosaic.version = 11 : i64} {
  func.func @mamba_block_kernel(%arg0: memref<16x32xf32, #tpu.memory_space<vmem>>, %arg1: memref<32x128xf32, #tpu.memory_space<vmem>>, %arg2: memref<64x96xf32, #tpu.memory_space<vmem>>, %arg3: memref<64x32xf32, #tpu.memory_space<vmem>>, %arg4: memref<8x128xf32, #tpu.memory_space<vmem>>, %arg5: memref<16x32xf32, #tpu.memory_space<vmem>>) attributes {dimension_semantics = [], scalar_prefetch = 0 : i64, scratch_operands = 0 : i64, tpu.core_type = #tpu.core_type<tc>} {
    %c0 = arith.constant 0 : index
    %c0_0 = arith.constant 0 : index
    %0 = vector.load %arg0[%c0, %c0_0] : memref<16x32xf32, #tpu.memory_space<vmem>>, vector<16x32xf32>
    %c0_1 = arith.constant 0 : index
    %c0_2 = arith.constant 0 : index
    %1 = vector.load %arg4[%c0_1, %c0_2] : memref<8x128xf32, #tpu.memory_space<vmem>>, vector<1x128xf32>
    %c0_3 = arith.constant 0 : index
    %c0_4 = arith.constant 0 : index
    %2 = vector.load %arg1[%c0_3, %c0_4] : memref<32x128xf32, #tpu.memory_space<vmem>>, vector<32x128xf32>
    %cst = arith.constant dense<0.000000e+00> : vector<16x128xf32>
    %3 = tpu.matmul %0, %2, %cst {dimension_numbers = #tpu.dot_dimension_numbers<[1], [0], [0], [1], [0, 0, 1, 1], [], []>} : vector<16x32xf32>, vector<32x128xf32>, vector<16x128xf32> -> vector<16x128xf32>
    %4 = vector.broadcast %1 : vector<1x128xf32> to vector<16x128xf32>
    %5 = arith.addf %3, %4 : vector<16x128xf32>
    %6 = vector.extract_strided_slice %5 {offsets = [0, 0], sizes = [16, 64], strides = [1, 1]} : vector<16x128xf32> to vector<16x64xf32>
    %7 = vector.extract_strided_slice %5 {offsets = [0, 64], sizes = [16, 64], strides = [1, 1]} : vector<16x128xf32> to vector<16x64xf32>
    %c1 = arith.constant 1 : index
    %c0_5 = arith.constant 0 : index
    %8 = vector.load %arg4[%c1, %c0_5] : memref<8x128xf32, #tpu.memory_space<vmem>>, vector<1x64xf32>
    %c2 = arith.constant 2 : index
    %c0_6 = arith.constant 0 : index
    %9 = vector.load %arg4[%c2, %c0_6] : memref<8x128xf32, #tpu.memory_space<vmem>>, vector<1x64xf32>
    %10 = vector.extract_strided_slice %6 {offsets = [0, 0], sizes = [1, 64], strides = [1, 1]} : vector<16x64xf32> to vector<1x64xf32>
    %11 = vector.extract_strided_slice %6 {offsets = [8, 0], sizes = [1, 64], strides = [1, 1]} : vector<16x64xf32> to vector<1x64xf32>
    %12 = tpu.concatenate %10, %11 in 0 : vector<1x64xf32>, vector<1x64xf32> -> vector<2x64xf32>
    %13 = vector.broadcast %8 : vector<1x64xf32> to vector<2x64xf32>
    %14 = arith.mulf %12, %13 : vector<2x64xf32>
    %15 = vector.broadcast %9 : vector<1x64xf32> to vector<2x64xf32>
    %16 = arith.addf %14, %15 : vector<2x64xf32>
    %17 = arith.negf %16 : vector<2x64xf32>
    %18 = math.exp %17 : vector<2x64xf32>
    %cst_7 = arith.constant 1.000000e+00 : f32
    %19 = vector.broadcast %cst_7 : f32 to vector<2x64xf32>
    %20 = arith.addf %19, %18 : vector<2x64xf32>
    %21 = arith.divf %19, %20 : vector<2x64xf32>
    %22 = arith.mulf %16, %21 : vector<2x64xf32>
    %c3 = arith.constant 3 : index
    %c0_8 = arith.constant 0 : index
    %23 = vector.load %arg4[%c3, %c0_8] : memref<8x128xf32, #tpu.memory_space<vmem>>, vector<1x64xf32>
    %c4 = arith.constant 4 : index
    %c0_9 = arith.constant 0 : index
    %24 = vector.load %arg4[%c4, %c0_9] : memref<8x128xf32, #tpu.memory_space<vmem>>, vector<1x64xf32>
    %c0_10 = arith.constant 0 : index
    %c0_11 = arith.constant 0 : index
    %25 = vector.load %arg2[%c0_10, %c0_11] : memref<64x96xf32, #tpu.memory_space<vmem>>, vector<64x96xf32>
    %cst_12 = arith.constant dense<0.000000e+00> : vector<2x96xf32>
    %26 = tpu.matmul %22, %25, %cst_12 {dimension_numbers = #tpu.dot_dimension_numbers<[1], [0], [0], [1], [0, 0, 1, 1], [], []>} : vector<2x64xf32>, vector<64x96xf32>, vector<2x96xf32> -> vector<2x96xf32>
    %27 = vector.extract_strided_slice %26 {offsets = [0, 0], sizes = [2, 64], strides = [1, 1]} : vector<2x96xf32> to vector<2x64xf32>
    %28 = vector.broadcast %23 : vector<1x64xf32> to vector<2x64xf32>
    %29 = arith.addf %27, %28 : vector<2x64xf32>
    %cst_13 = arith.constant 0.000000e+00 : f32
    %30 = vector.broadcast %cst_13 : f32 to vector<2x64xf32>
    %31 = arith.maximumf %29, %30 : vector<2x64xf32>
    %32 = vector.broadcast %cst_13 : f32 to vector<2x64xf32>
    %33 = arith.subf %29, %32 : vector<2x64xf32>
    %34 = arith.cmpf one, %33, %33 : vector<2x64xf32>
    %35 = vector.broadcast %cst_13 : f32 to vector<2x64xf32>
    %36 = arith.addf %29, %35 : vector<2x64xf32>
    %37 = math.absf %33 : vector<2x64xf32>
    %cst_14 = arith.constant 0.000000e+00 : f32
    %38 = vector.broadcast %cst_14 : f32 to vector<2x64xf32>
    %39 = arith.subf %38, %37 : vector<2x64xf32>
    %40 = math.exp %39 : vector<2x64xf32>
    %41 = math.log1p %40 : vector<2x64xf32>
    %42 = arith.addf %31, %41 : vector<2x64xf32>
    %43 = arith.select %34, %36, %42 : vector<2x64xi1>, vector<2x64xf32>
    %44 = vector.extract_strided_slice %26 {offsets = [0, 64], sizes = [2, 16], strides = [1, 1]} : vector<2x96xf32> to vector<2x16xf32>
    %45 = vector.extract_strided_slice %26 {offsets = [0, 80], sizes = [2, 16], strides = [1, 1]} : vector<2x96xf32> to vector<2x16xf32>
    %46 = arith.mulf %44, %45 : vector<2x16xf32>
    %cst_15 = arith.constant dense<0.000000e+00> : vector<2xf32>
    %47 = vector.multi_reduction <add>, %46, %cst_15 [1] : vector<2x16xf32> to vector<2xf32>
    %48 = vector.shape_cast %47 : vector<2xf32> to vector<2x1xf32>
    %49 = arith.mulf %43, %22 : vector<2x64xf32>
    %50 = vector.broadcast %48 : vector<2x1xf32> to vector<2x64xf32>
    %51 = arith.mulf %50, %49 : vector<2x64xf32>
    %52 = vector.broadcast %24 : vector<1x64xf32> to vector<2x64xf32>
    %53 = arith.mulf %22, %52 : vector<2x64xf32>
    %54 = arith.addf %51, %53 : vector<2x64xf32>
    %55 = vector.extract_strided_slice %54 {offsets = [0, 0], sizes = [1, 64], strides = [1, 1]} : vector<2x64xf32> to vector<1x64xf32>
    %56 = vector.shape_cast %55 : vector<1x64xf32> to vector<1x64xf32>
    %57 = vector.broadcast %56 : vector<1x64xf32> to vector<8x64xf32>
    %58 = vector.extract_strided_slice %54 {offsets = [1, 0], sizes = [1, 64], strides = [1, 1]} : vector<2x64xf32> to vector<1x64xf32>
    %59 = vector.shape_cast %58 : vector<1x64xf32> to vector<1x64xf32>
    %60 = vector.broadcast %59 : vector<1x64xf32> to vector<8x64xf32>
    %61 = tpu.concatenate %57, %60 in 0 : vector<8x64xf32>, vector<8x64xf32> -> vector<16x64xf32>
    %62 = arith.negf %7 : vector<16x64xf32>
    %63 = math.exp %62 : vector<16x64xf32>
    %cst_16 = arith.constant 1.000000e+00 : f32
    %64 = vector.broadcast %cst_16 : f32 to vector<16x64xf32>
    %65 = arith.addf %64, %63 : vector<16x64xf32>
    %66 = arith.divf %64, %65 : vector<16x64xf32>
    %67 = arith.mulf %7, %66 : vector<16x64xf32>
    %68 = arith.mulf %61, %67 : vector<16x64xf32>
    %c5 = arith.constant 5 : index
    %c0_17 = arith.constant 0 : index
    %69 = vector.load %arg4[%c5, %c0_17] : memref<8x128xf32, #tpu.memory_space<vmem>>, vector<1x32xf32>
    %c0_18 = arith.constant 0 : index
    %c0_19 = arith.constant 0 : index
    %70 = vector.load %arg3[%c0_18, %c0_19] : memref<64x32xf32, #tpu.memory_space<vmem>>, vector<64x32xf32>
    %cst_20 = arith.constant dense<0.000000e+00> : vector<16x32xf32>
    %71 = tpu.matmul %68, %70, %cst_20 {dimension_numbers = #tpu.dot_dimension_numbers<[1], [0], [0], [1], [0, 0, 1, 1], [], []>} : vector<16x64xf32>, vector<64x32xf32>, vector<16x32xf32> -> vector<16x32xf32>
    %72 = vector.broadcast %69 : vector<1x32xf32> to vector<16x32xf32>
    %73 = arith.addf %71, %72 : vector<16x32xf32>
    %c0_21 = arith.constant 0 : index
    %c0_22 = arith.constant 0 : index
    %74 = vector.load %arg5[%c0_21, %c0_22] : memref<16x32xf32, #tpu.memory_space<vmem>>, vector<16x32xf32>
    tpu.vector_store %arg5[%c0_21, %c0_22], %73 {strides = array<i32>} : memref<16x32xf32, #tpu.memory_space<vmem>>, vector<16x32xf32>,
    return
  }
}

</mosaic_0001>

<llo_original>
// kernel: tpu_custom_call.1
$region0: #{tpu_custom_call.1}
  #allocation0 [shape = 'u32[]', space=smem, size = 0x4, offset = 0x4, fixed_abs, tag = 'smem constant byte address 0x4 - core index']
  #allocation1 [shape = 'u32[144,128]{1,0:T(1,128)}', space=vmem, size = 0x12000, scoped, tag = 'internal scratch']
  %s0 = inlined_call_operand.hbm [shape: f32[16,32], index: 0, kind: input, shape index: {}]
  %s1 = inlined_call_operand.vmem [shape: f32[32,128], index: 1, kind: input, shape index: {}]
  %s2 = inlined_call_operand.vmem [shape: f32[64,96], index: 2, kind: input, shape index: {}]
  %s3 = inlined_call_operand.vmem [shape: f32[64,32], index: 3, kind: input, shape index: {}]
  %s4 = inlined_call_operand.vmem [shape: f32[8,128], index: 4, kind: input, shape index: {}]
  %s5 = inlined_call_operand.hbm [shape: f32[16,32], index: 5, kind: output, shape index: {}]
  %s6 = sld [smem:[#allocation0]]
  $region34: #{tpu_custom_call.1} parent=0
    _
  %s8 = ssub.s32 1, %s6
  %s9 = scalar_select 0, %s8, %s6
  $region1: #{tpu_custom_call.1} parent=0
    #allocation2 [shape = 'u8[8192]{0}', space=vmem, size = 0x2000, scoped, tag = 'input window, operand 0, single buffered']
    #allocation3 [shape = 's32[1]{0}', space=sflag, size = 0x4, scoped, tag = 'scoped memory for tpu_custom_call.1']
    #allocation4 [shape = 's32[1]{0}', space=sflag, size = 0x4, scoped, tag = 'scoped memory for tpu_custom_call.1']
    #allocation5 [shape = 'u8[8192]{0}', space=vmem, size = 0x2000, scoped, tag = 'output window, operand 0, single buffered']
    %10 = vsyncpa [#allocation3], 0
    %11 = vsyncpa [#allocation4], 0
    // Predicated region
    $region2: #{tpu_custom_call.1} parent=1 // pred_check
      _
    $region3: #{tpu_custom_call.1} parent=1 // pred_check_branch
      %13 = sbr.rel (0) target = $region5
    $region4: #{tpu_custom_call.1} parent=1 // pred_region
      %s15 = ssub.s32 256, 256
      %16 = vsyncadd [#allocation3], %s15
      %s17 = sshll.u32 [#allocation2], 4
      %s18 = int_to_ptr.vmem [resolvable:$true] %s17
      %23 = dma.hbm_to_vmem [thread:$0]  %s0, 256, %s18, [#allocation3], 128, 128, 8
    $region5: #{tpu_custom_call.1} parent=1 // pred_fallthru
      _
    // Predicated region
    $region6: #{tpu_custom_call.1} parent=1 // pred_check
      _
    $region7: #{tpu_custom_call.1} parent=1 // pred_check_branch
      %25 = sbr.rel (0) target = $region9
    $region8: #{tpu_custom_call.1} parent=1 // pred_region
      _
    $region9: #{tpu_custom_call.1} parent=1 // pred_fallthru
      _
    // Predicated region
    $region10: #{tpu_custom_call.1} parent=1 // pred_check
      _
    $region11: #{tpu_custom_call.1} parent=1 // pred_check_branch
      %27 = sbr.rel (0) target = $region13
    $region12: #{tpu_custom_call.1} parent=1 // pred_region
      _
    $region13: #{tpu_custom_call.1} parent=1 // pred_fallthru
      _
    // Predicated region
    $region14: #{tpu_custom_call.1} parent=1 // pred_check
      _
    $region15: #{tpu_custom_call.1} parent=1 // pred_check_branch
      %29 = sbr.rel (0) target = $region17
    $region16: #{tpu_custom_call.1} parent=1 // pred_region
      _
    $region17: #{tpu_custom_call.1} parent=1 // pred_fallthru
      _
    // Predicated region
    $region18: #{tpu_custom_call.1} parent=1 // pred_check
      _
    $region19: #{tpu_custom_call.1} parent=1 // pred_check_branch
      %31 = sbr.rel (0) target = $region21
    $region20: #{tpu_custom_call.1} parent=1 // pred_region
      _
    $region21: #{tpu_custom_call.1} parent=1 // pred_fallthru
      _
    // Predicated region
    $region22: #{tpu_custom_call.1} parent=1 // pred_check
      _
    $region23: #{tpu_custom_call.1} parent=1 // pred_check_branch
      %33 = sbr.rel (0) target = $region25
    $region24: #{tpu_custom_call.1} parent=1 // pred_region
      %34 = dma.done [#allocation3], 256
    $region25: #{tpu_custom_call.1} parent=1 // pred_fallthru
      _
    %v35 = vld [vmem:[#allocation2] sm:$0xff]
    %v36 = vld [vmem:[#allocation2 + $0x8] sm:$0xff]
    %v37 = vld [vmem:[%s4] sm:$0x1]
    %v38 = vld [vmem:[%s1] sm:$0xff]
    %v39 = vld [vmem:[%s1 + $0x8] sm:$0xff]
    %v40 = vld [vmem:[%s1 + $0x10] sm:$0xff]
    %v41 = vld [vmem:[%s1 + $0x18] sm:$0xff]
    %v42 = vlaneseq
    %v43 = vshrl.u32 %v42, 7
    %v44 = vsub.s32 0, %v43
    %v45 = vrot.slane %v37, %v44
    %vm46 = vcmask 261120
    %v48 = vsel %vm46, %v35, 0
    %v51 = vsel %vm46, %v36, 0
    %53 = vmatprep.subr.mxu0 0.0
    %54 = vmatpush1.msra.mxu0 %v38
    %55 = vmatprep.subr.mxu0 0.0
    %56 = vmatpush1.msra.mxu0 %v39
    %57 = vmatprep.subr.mxu0 0.0
    %58 = vmatpush1.msra.mxu0 %v40
    %59 = vmatprep.subr.mxu0 0.0
    %60 = vmatpush1.msra.mxu0 %v41
    %61 = vmatprep.subr.mxu0 0.0
    %62 = vmatpush1.msra.mxu0 0.0
    %63 = vmatprep.subr.mxu0 0.0
    %64 = vmatpush1.msra.mxu0 0.0
    %65 = vmatprep.subr.mxu0 0.0
    %66 = vmatpush1.msra.mxu0 0.0
    %67 = vmatprep.subr.mxu0 0.0
    %68 = vmatpush1.msra.mxu0 0.0
    %69 = vmatprep.subr.mxu0 0.0
    %70 = vmatpush1.msra.mxu0 0.0
    %71 = vmatprep.subr.mxu0 0.0
    %72 = vmatpush1.msra.mxu0 0.0
    %73 = vmatprep.subr.mxu0 0.0
    %74 = vmatpush1.msra.mxu0 0.0
    %75 = vmatprep.subr.mxu0 0.0
    %76 = vmatpush1.msra.mxu0 0.0
    %77 = vmatprep.subr.mxu0 0.0
    %78 = vmatpush1.msra.mxu0 0.0
    %79 = vmatprep.subr.mxu0 0.0
    %80 = vmatpush1.msra.mxu0 0.0
    %81 = vmatprep.subr.mxu0 0.0
    %82 = vmatpush1.msra.mxu0 0.0
    %83 = vmatprep.subr.mxu0 0.0
    %84 = vmatpush1.msra.mxu0 0.0
    %85 = vmatprep.subr.mxu0 0.0
    %86 = vmatpush1.msra.mxu0 0.0
    %87 = vmatprep.subr.mxu0 0.0
    %88 = vmatpush1.msra.mxu0 0.0
    %89 = vmatprep.subr.mxu0 0.0
    %90 = vmatpush1.msra.mxu0 0.0
    %91 = vmatprep.subr.mxu0 0.0
    %92 = vmatpush1.msra.mxu0 0.0
    %93 = vmatprep.subr.mxu0 0.0
    %94 = vmatpush1.msra.mxu0 0.0
    %95 = vmatprep.subr.mxu0 0.0
    %96 = vmatpush1.msra.mxu0 0.0
    %97 = vmatprep.subr.mxu0 0.0
    %98 = vmatpush1.msra.mxu0 0.0
    %99 = vmatprep.subr.mxu0 0.0
    %100 = vmatpush1.msra.mxu0 0.0
    %101 = vmatprep.subr.mxu0 0.0
    %102 = vmatpush1.msra.mxu0 0.0
    %103 = vmatprep.subr.mxu0 0.0
    %104 = vmatpush1.msra.mxu0 0.0
    %105 = vmatprep.subr.mxu0 0.0
    %106 = vmatpush1.msra.mxu0 0.0
    %107 = vmatprep.subr.mxu0 0.0
    %108 = vmatpush1.msra.mxu0 0.0
    %109 = vmatprep.subr.mxu0 0.0
    %110 = vmatpush1.msra.mxu0 0.0
    %111 = vmatprep.subr.mxu0 0.0
    %112 = vmatpush1.msra.mxu0 0.0
    %113 = vmatprep.subr.mxu0 0.0
    %114 = vmatpush1.msra.mxu0 0.0
    %115 = vmatprep.subr.mxu0 0.0
    %116 = vmatpush1.msra.mxu0 0.0
    %117 = vmatprep.mubr.f32.mxu0 0.0
    %118 = vmatmul.mubr.f32.gmra.mrb[0].mxu0 %v48
    %v119 = vpop.f32.mrb[0].mxu0
    %v120 = vadd.f32 %v45, %v119
    %v121 = vpop.f32.mrb[0].mxu0
    %122 = vmatprep.mubr.f32.mxu0 0.0
    %123 = vmatmul.mubr.f32.gmra.mrb[0].mxu0 %v51
    %v124 = vpop.f32.mrb[0].mxu0
    %v125 = vadd.f32 %v45, %v124
    %v126 = vpop.f32.mrb[0].mxu0
    %127 = vdwg.mxu0
    %v128 = vld [vmem:[%s4 + $0x1] sm:$0x1]
    %v129 = vld [vmem:[%s4 + $0x2] sm:$0x1]
    %v131 = vrot.slane %v125, 7
    %vm133 = vcmask 1040384
    %v134 = vsel %vm133, %v120, %v131
    %v135 = vlaneseq
    %v136 = vshrl.u32 %v135, 7
    %v137 = vsub.s32 0, %v136
    %v138 = vrot.slane %v128, %v137
    %v139 = vmul.f32 %v134, %v138
    %v140 = vlaneseq
    %v141 = vshrl.u32 %v140, 7
    %v142 = vsub.s32 0, %v141
    %v143 = vrot.slane %v129, %v142
    %v144 = vadd.f32 %v139, %v143
    %v145 = vxor.u32 %v144, 2147483648
    %v146 = vmul.f32 %v145, 1.442695
    %v147 = vpow.pop %v146
    %v148 = vadd.f32 %v147, 1.0
    %v149 = vrcp.pop %v148
    %v150 = vmul.f32 1.0, %v149
    %v151 = vmul.f32 %v144, %v150
    %v152 = vld [vmem:[%s4 + $0x3] sm:$0x1]
    %v153 = vld [vmem:[%s4 + $0x4] sm:$0x1]
    %v154 = vld [vmem:[%s2] sm:$0xff]
    %v155 = vld [vmem:[%s2 + $0x8] sm:$0xff]
    %v156 = vld [vmem:[%s2 + $0x10] sm:$0xff]
    %v157 = vld [vmem:[%s2 + $0x18] sm:$0xff]
    %v158 = vld [vmem:[%s2 + $0x20] sm:$0xff]
    %v159 = vld [vmem:[%s2 + $0x28] sm:$0xff]
    %v160 = vld [vmem:[%s2 + $0x30] sm:$0xff]
    %v161 = vld [vmem:[%s2 + $0x38] sm:$0xff]
    %vm162 = vcmask 523264
    %v164 = vsel %vm162, %v151, 0
    %166 = vmatprep.subr.mxu0 0.0
    %167 = vmatpush1.msra.mxu0 %v154
    %168 = vmatprep.subr.mxu0 0.0
    %169 = vmatpush1.msra.mxu0 %v155
    %170 = vmatprep.subr.mxu0 0.0
    %171 = vmatpush1.msra.mxu0 %v156
    %172 = vmatprep.subr.mxu0 0.0
    %173 = vmatpush1.msra.mxu0 %v157
    %174 = vmatprep.subr.mxu0 0.0
    %175 = vmatpush1.msra.mxu0 %v158
    %176 = vmatprep.subr.mxu0 0.0
    %177 = vmatpush1.msra.mxu0 %v159
    %178 = vmatprep.subr.mxu0 0.0
    %179 = vmatpush1.msra.mxu0 %v160
    %180 = vmatprep.subr.mxu0 0.0
    %181 = vmatpush1.msra.mxu0 %v161
    %182 = vmatprep.subr.mxu0 0.0
    %183 = vmatpush1.msra.mxu0 0.0
    %184 = vmatprep.subr.mxu0 0.0
    %185 = vmatpush1.msra.mxu0 0.0
    %186 = vmatprep.subr.mxu0 0.0
    %187 = vmatpush1.msra.mxu0 0.0
    %188 = vmatprep.subr.mxu0 0.0
    %189 = vmatpush1.msra.mxu0 0.0
    %190 = vmatprep.subr.mxu0 0.0
    %191 = vmatpush1.msra.mxu0 0.0
    %192 = vmatprep.subr.mxu0 0.0
    %193 = vmatpush1.msra.mxu0 0.0
    %194 = vmatprep.subr.mxu0 0.0
    %195 = vmatpush1.msra.mxu0 0.0
    %196 = vmatprep.subr.mxu0 0.0
    %197 = vmatpush1.msra.mxu0 0.0
    %198 = vmatprep.subr.mxu0 0.0
    %199 = vmatpush1.msra.mxu0 0.0
    %200 = vmatprep.subr.mxu0 0.0
    %201 = vmatpush1.msra.mxu0 0.0
    %202 = vmatprep.subr.mxu0 0.0
    %203 = vmatpush1.msra.mxu0 0.0
    %204 = vmatprep.subr.mxu0 0.0
    %205 = vmatpush1.msra.mxu0 0.0
    %206 = vmatprep.subr.mxu0 0.0
    %207 = vmatpush1.msra.mxu0 0.0
    %208 = vmatprep.subr.mxu0 0.0
    %209 = vmatpush1.msra.mxu0 0.0
    %210 = vmatprep.subr.mxu0 0.0
    %211 = vmatpush1.msra.mxu0 0.0
    %212 = vmatprep.subr.mxu0 0.0
    %213 = vmatpush1.msra.mxu0 0.0
    %214 = vmatprep.subr.mxu0 0.0
    %215 = vmatpush1.msra.mxu0 0.0
    %216 = vmatprep.subr.mxu0 0.0
    %217 = vmatpush1.msra.mxu0 0.0
    %218 = vmatprep.subr.mxu0 0.0
    %219 = vmatpush1.msra.mxu0 0.0
    %220 = vmatprep.subr.mxu0 0.0
    %221 = vmatpush1.msra.mxu0 0.0
    %222 = vmatprep.subr.mxu0 0.0
    %223 = vmatpush1.msra.mxu0 0.0
    %224 = vmatprep.subr.mxu0 0.0
    %225 = vmatpush1.msra.mxu0 0.0
    %226 = vmatprep.subr.mxu0 0.0
    %227 = vmatpush1.msra.mxu0 0.0
    %228 = vmatprep.subr.mxu0 0.0
    %229 = vmatpush1.msra.mxu0 0.0
    %230 = vmatprep.mubr.f32.mxu0 0.0
    %231 = vmatmul.mubr.f32.gmra.mrb[0].mxu0 %v164
    %v232 = vpop.f32.mrb[0].mxu0
    %v233 = vadd.f32 0.0, %v232
    %v234 = vpop.f32.mrb[0].mxu0
    %235 = vdwg.mxu0
    %v236 = vlaneseq
    %v237 = vshrl.u32 %v236, 7
    %v238 = vsub.s32 0, %v237
    %v239 = vrot.slane %v152, %v238
    %v240 = vadd.f32 %v233, %v239
    %v241 = vmax.f32 %v240, 0.0
    %vm242 = vcmp.ne.f32.partialorder %v240, %v240
    %v243 = vadd.f32 %v240, 0.0
    %v244 = vand.u32 2147483647, %v240
    %v245 = vsub.f32 0.0, %v244
    %v246 = vmul.f32 %v245, 1.442695
    %v247 = vpow.pop %v246
    %v248 = vadd.f32 %v247, 1.0
    %v249 = vlog2.pop %v248
    %v250 = vmul.f32 %v249, 0.6931472
    %v251 = vmul.f32 -0.5, %v247
    %v252 = vadd.f32 %v251, 1.0
    %v253 = vmul.f32 %v252, %v247
    %v254 = vand.u32 2147483647, %v247
    %vm255 = vcmp.lt.f32.partialorder %v254, 0.0004427343
    %v256 = vsel %vm255, %v253, %v250
    %v257 = vadd.f32 %v241, %v256
    %v258 = vsel %vm242, %v243, %v257
    %260 = vrot.lane.b32.xlu0 %v233, 112
    %v261 = vpop.permute.xlu0 %260
    %v263 = vmul.f32 %v233, %v261
    %265 = vrot.lane.b32.xlu0 %v263, 64
    %v266 = vpop.permute.xlu0 %265
    %vm268 = vcmask 123904
    %v269 = vsel %vm268, %v266, 0.0
    %270 = vadd.xlane.f32.xlu0 %v269
    %v271 = vpop.xlane.xlu0 %270
    %v272 = vmul.f32 %v258, %v151
    %v273 = vmul.f32 %v271, %v272
    %v274 = vlaneseq
    %v275 = vshrl.u32 %v274, 7
    %v276 = vsub.s32 0, %v275
    %v277 = vrot.slane %v153, %v276
    %v278 = vmul.f32 %v151, %v277
    %v279 = vadd.f32 %v273, %v278
    %v280 = vlaneseq
    %v281 = vshrl.u32 %v280, 7
    %v282 = vsub.s32 0, %v281
    %v283 = vrot.slane %v279, %v282
    %v284 = vlaneseq
    %v285 = vshrl.u32 %v284, 7
    %v286 = vsub.s32 1, %v285
    %v287 = vrot.slane %v279, %v286
    %v288 = vxor.u32 %v120, 2147483648
    %v289 = vxor.u32 %v125, 2147483648
    %v290 = vmul.f32 %v288, 1.442695
    %v291 = vpow.pop %v290
    %v292 = vmul.f32 %v289, 1.442695
    %v293 = vpow.pop %v292
    %v294 = vadd.f32 %v291, 1.0
    %v295 = vadd.f32 %v293, 1.0
    %v296 = vrcp.pop %v294
    %v297 = vmul.f32 1.0, %v296
    %v298 = vrcp.pop %v295
    %v299 = vmul.f32 1.0, %v298
    %v300 = vmul.f32 %v120, %v297
    %v301 = vmul.f32 %v125, %v299
    %304 = vrot.lane.b32.xlu0 %v300, 64
    %v305 = vpop.permute.xlu0 %304
    %306 = vrot.lane.b32.xlu0 %v301, 64
    %v307 = vpop.permute.xlu0 %306
    %v310 = vmul.f32 %v283, %v305
    %v311 = vmul.f32 %v287, %v307
    %v312 = vld [vmem:[%s4 + $0x5] sm:$0x1]
    %v313 = vld [vmem:[%s3] sm:$0xff]
    %v314 = vld [vmem:[%s3 + $0x8] sm:$0xff]
    %v315 = vld [vmem:[%s3 + $0x10] sm:$0xff]
    %v316 = vld [vmem:[%s3 + $0x18] sm:$0xff]
    %v317 = vld [vmem:[%s3 + $0x20] sm:$0xff]
    %v318 = vld [vmem:[%s3 + $0x28] sm:$0xff]
    %v319 = vld [vmem:[%s3 + $0x30] sm:$0xff]
    %v320 = vld [vmem:[%s3 + $0x38] sm:$0xff]
    %v321 = vlaneseq
    %v322 = vshrl.u32 %v321, 7
    %v323 = vsub.s32 0, %v322
    %v324 = vrot.slane %v312, %v323
    %v326 = vsel %vm162, %v310, 0
    %v329 = vsel %vm162, %v311, 0
    %331 = vmatprep.subr.mxu0 0.0
    %332 = vmatpush1.msra.mxu0 %v313
    %333 = vmatprep.subr.mxu0 0.0
    %334 = vmatpush1.msra.mxu0 %v314
    %335 = vmatprep.subr.mxu0 0.0
    %336 = vmatpush1.msra.mxu0 %v315
    %337 = vmatprep.subr.mxu0 0.0
    %338 = vmatpush1.msra.mxu0 %v316
    %339 = vmatprep.subr.mxu0 0.0
    %340 = vmatpush1.msra.mxu0 %v317
    %341 = vmatprep.subr.mxu0 0.0
    %342 = vmatpush1.msra.mxu0 %v318
    %343 = vmatprep.subr.mxu0 0.0
    %344 = vmatpush1.msra.mxu0 %v319
    %345 = vmatprep.subr.mxu0 0.0
    %346 = vmatpush1.msra.mxu0 %v320
    %347 = vmatprep.subr.mxu0 0.0
    %348 = vmatpush1.msra.mxu0 0.0
    %349 = vmatprep.subr.mxu0 0.0
    %350 = vmatpush1.msra.mxu0 0.0
    %351 = vmatprep.subr.mxu0 0.0
    %352 = vmatpush1.msra.mxu0 0.0
    %353 = vmatprep.subr.mxu0 0.0
    %354 = vmatpush1.msra.mxu0 0.0
    %355 = vmatprep.subr.mxu0 0.0
    %356 = vmatpush1.msra.mxu0 0.0
    %357 = vmatprep.subr.mxu0 0.0
    %358 = vmatpush1.msra.mxu0 0.0
    %359 = vmatprep.subr.mxu0 0.0
    %360 = vmatpush1.msra.mxu0 0.0
    %361 = vmatprep.subr.mxu0 0.0
    %362 = vmatpush1.msra.mxu0 0.0
    %363 = vmatprep.subr.mxu0 0.0
    %364 = vmatpush1.msra.mxu0 0.0
    %365 = vmatprep.subr.mxu0 0.0
    %366 = vmatpush1.msra.mxu0 0.0
    %367 = vmatprep.subr.mxu0 0.0
    %368 = vmatpush1.msra.mxu0 0.0
    %369 = vmatprep.subr.mxu0 0.0
    %370 = vmatpush1.msra.mxu0 0.0
    %371 = vmatprep.subr.mxu0 0.0
    %372 = vmatpush1.msra.mxu0 0.0
    %373 = vmatprep.subr.mxu0 0.0
    %374 = vmatpush1.msra.mxu0 0.0
    %375 = vmatprep.subr.mxu0 0.0
    %376 = vmatpush1.msra.mxu0 0.0
    %377 = vmatprep.subr.mxu0 0.0
    %378 = vmatpush1.msra.mxu0 0.0
    %379 = vmatprep.subr.mxu0 0.0
    %380 = vmatpush1.msra.mxu0 0.0
    %381 = vmatprep.subr.mxu0 0.0
    %382 = vmatpush1.msra.mxu0 0.0
    %383 = vmatprep.subr.mxu0 0.0
    %384 = vmatpush1.msra.mxu0 0.0
    %385 = vmatprep.subr.mxu0 0.0
    %386 = vmatpush1.msra.mxu0 0.0
    %387 = vmatprep.subr.mxu0 0.0
    %388 = vmatpush1.msra.mxu0 0.0
    %389 = vmatprep.subr.mxu0 0.0
    %390 = vmatpush1.msra.mxu0 0.0
    %391 = vmatprep.subr.mxu0 0.0
    %392 = vmatpush1.msra.mxu0 0.0
    %393 = vmatprep.subr.mxu0 0.0
    %394 = vmatpush1.msra.mxu0 0.0
    %395 = vmatprep.mubr.f32.mxu0 0.0
    %396 = vmatmul.mubr.f32.gmra.mrb[0].mxu0 %v326
    %v397 = vpop.f32.mrb[0].mxu0
    %v398 = vadd.f32 %v324, %v397
    %v399 = vpop.f32.mrb[0].mxu0
    %400 = vmatprep.mubr.f32.mxu0 0.0
    %401 = vmatmul.mubr.f32.gmra.mrb[0].mxu0 %v329
    %v402 = vpop.f32.mrb[0].mxu0
    %v403 = vadd.f32 %v324, %v402
    %v404 = vpop.f32.mrb[0].mxu0
    %405 = vdwg.mxu0
    %406 = vst.msk [vmem:[#allocation5] sm:$0xff] %vm46, %v398
    %407 = vst.msk [vmem:[#allocation5 + $0x8] sm:$0xff] %vm46, %v403
    // Predicated region
    $region26: #{tpu_custom_call.1} parent=1 // pred_check
      _
    $region27: #{tpu_custom_call.1} parent=1 // pred_check_branch
      %409 = sbr.rel (0) target = $region29
    $region28: #{tpu_custom_call.1} parent=1 // pred_region
      %s411 = ssub.s32 256, 256
      %412 = vsyncadd [#allocation4], %s411
      %s413 = sshll.u32 [#allocation5], 4
      %s414 = int_to_ptr.vmem [resolvable:$true] %s413
      %419 = dma.vmem_to_hbm [thread:$0]  %s414, 256, %s5, [#allocation4], 128, 128, 8
    $region29: #{tpu_custom_call.1} parent=1 // pred_fallthru
      _
    // Predicated region
    $region30: #{tpu_custom_call.1} parent=1 // pred_check
      _
    $region31: #{tpu_custom_call.1} parent=1 // pred_check_branch
      %421 = sbr.rel (0) target = $region33
    $region32: #{tpu_custom_call.1} parent=1 // pred_region
      %422 = dma.done [#allocation4], 256
    $region33: #{tpu_custom_call.1} parent=1 // pred_fallthru
      _
    %423 = vsyncpa [#allocation3], 1
    %424 = vsyncpa [#allocation4], 1

</llo_original>
